<compile_context>
chip_gen: v7x
topology: tpu7x:2x2x1
jax: 0.10.0
libtpu: 0.0.40
codegen_flags: <defaults>
</compile_context>

<pallas_src>
import jax
import jax.numpy as jnp
from jax.experimental import pallas as pl
from jax.experimental.pallas import tpu as pltpu

LN_EPS = 1e-5  # torch.nn.LayerNorm default


def _round_up(x, m):
    return ((x + m - 1) // m) * m


def _sublane_multiple(dtype):
    bpe = jnp.dtype(dtype).itemsize
    if bpe >= 4:
        return 8
    if bpe == 2:
        return 16
    return 32


def _vmem_capacity_bytes():
    """Physical VMEM of the current chip; conservative fallback (v7x per-TC)."""
    try:
        info = pltpu.get_tpu_info()
        cap = int(getattr(info, "vmem_capacity_bytes", 0) or 0)
        if cap > 0:
            return cap
    except Exception:
        pass
    return 64 * 1024 * 1024


# ----------------------------- kernel bodies --------------------------------

def _bias_relu(acc_f32, pgb_ref):
    bias = pgb_ref[0:1, :].astype(jnp.float32)
    return jnp.maximum(acc_f32 + bias, 0.0)


def _layernorm(h, pgb_ref, out_dtype):
    gamma = pgb_ref[1:2, :].astype(jnp.float32)
    beta = pgb_ref[2:3, :].astype(jnp.float32)
    inv_n = 1.0 / h.shape[-1]
    mean = jnp.sum(h, axis=-1, keepdims=True) * inv_n
    # Single-pass variance; clamp against catastrophic cancellation -> NaN.
    var = jnp.maximum(jnp.sum(h * h, axis=-1, keepdims=True) * inv_n - mean * mean, 0.0)
    inv_std = jax.lax.rsqrt(var + LN_EPS)               # EUP slot
    # gamma folded into the per-row scale.
    return ((h - mean) * (inv_std * gamma) + beta).astype(out_dtype)


def _fullk_kernel(x_ref, w_ref, pgb_ref, o_ref):
    # x_ref: (TM, K)  w_ref: (K, N)  pgb_ref: (3, N)  o_ref: (TM, N)
    acc = jnp.dot(x_ref[...], w_ref[...], preferred_element_type=jnp.float32)
    h = _bias_relu(acc, pgb_ref)
    o_ref[...] = _layernorm(h, pgb_ref, o_ref.dtype)


def _ktiled_kernel(x_ref, w_ref, pgb_ref, o_ref, acc_ref):
    # x_ref: (TM, TK)  w_ref: (TK, N)  pgb_ref: (3, N)  o_ref/acc_ref: (TM, N)
    k = pl.program_id(1)
    partial = jnp.dot(x_ref[...], w_ref[...], preferred_element_type=jnp.float32)

    @pl.when(k == 0)
    def _():
        acc_ref[...] = partial            # assign on first step (no zero-init pass)

    @pl.when(k > 0)
    def _():
        acc_ref[...] += partial

    @pl.when(k == pl.num_programs(1) - 1)
    def _():
        # Reuse the accumulator buffer for the post-ReLU tile (in place).
        acc_ref[...] = _bias_relu(acc_ref[...], pgb_ref)
        o_ref[...] = _layernorm(acc_ref[...], pgb_ref, o_ref.dtype)


# ------------------------------- wrapper -------------------------------------

def linear_layer_norm_relu(x, weight, bias, gamma, beta, *, tm=None, tk=None,
                           vmem_limit_bytes=None):
    """x: (B, in_features); weight: (out_features, in_features) [nn.Linear layout];
    bias / gamma / beta: (out_features,)."""
    B, K = x.shape
    N, K2 = weight.shape
    assert K == K2 and bias.shape == (N,) and gamma.shape == (N,) and beta.shape == (N,)

    out_dtype = x.dtype
    x_bpe = jnp.dtype(x.dtype).itemsize
    w_bpe = jnp.dtype(weight.dtype).itemsize
    o_bpe = jnp.dtype(out_dtype).itemsize

    # Pre-transpose once to (K, N): the kernel contracts (TM,TK) x (TK,N) on the
    # MXU with no per-tile transpose.  Under jit with fixed params XLA folds it.
    w_t = weight.T

    # ---- generation-aware VMEM budgets --------------------------------------
    vmem_cap = _vmem_capacity_bytes()
    usable = vmem_cap * 3 // 4            # headroom for Mosaic internals / pipeline
    weight_budget = vmem_cap * 3 // 8     # ~48 MiB on v5e/v6e (128 MiB), ~24 MiB on v7x

    sub = _sublane_multiple(x.dtype)      # dtype-aware sublane packing (8/16/32)

    # ---- K tiling ------------------------------------------------------------
    K_pad = K
    if tk is None:
        if 2 * K * N * w_bpe <= weight_budget or K <= 256:
            tk = K                        # full-K residency (common case)
        else:
            # Largest tk (multiple of 256 -> full MXU pass on v6e/v7x) whose
            # double-buffered weight tile fits the budget; prefer exact divisors
            # of K (no padding), otherwise pad K.
            tk_cap = max(256, (weight_budget // (2 * N * w_bpe)) // 256 * 256)
            tk = 0
            for c in range(tk_cap, 0, -256):
                if K % c == 0:
                    tk = c
                    break
            if tk == 0:
                tk = tk_cap
                K_pad = _round_up(K, tk)
    else:
        K_pad = _round_up(K, tk)
    k_steps = K_pad // tk
    if k_steps == 1:
        tk = K_pad

    # ---- M tiling (N- and dtype-aware, epilogue temporaries included) -------
    acc_row = (N * 4) if k_steps > 1 else 0
    per_row = (2 * tk * x_bpe             # x double buffer
               + 2 * N * o_bpe            # output double buffer
               + acc_row                  # f32 accumulator scratch
               + 3 * N * 4)               # epilogue temporaries (h, h*h, scaled)
    fixed = 2 * tk * N * w_bpe + 2 * 3 * N * 4   # weight + packed params (double-buffered)
    avail = max(usable - fixed, per_row * sub)
    tm_cap = max(sub, min(1024, (avail // per_row) // sub * sub))

    if tm is None:
        B_pad0 = _round_up(B, sub)
        if B_pad0 <= tm_cap:
            tm = B_pad0
            # Give both v7x TensorCores work when the batch is large enough.
            if tm >= 256 and tm % (2 * sub) == 0:
                tm = tm // 2
        else:
            # Largest multiple-of-`sub` divisor of B_pad0 under the cap (avoids
            # materializing a padded copy of x); otherwise just use the cap.
            tm = 0
            for c in range(tm_cap, sub - 1, -sub):
                if B_pad0 % c == 0:
                    tm = c
                    break
            if tm == 0:
                tm = tm_cap
    tm = max(sub, _round_up(min(tm, _round_up(B, sub)), sub))

    # ---- pad inputs only when strictly necessary ------------------------------
    B_pad = _round_up(B, tm)
    x_p = x if B_pad == B else jnp.pad(x, ((0, B_pad - B), (0, 0)))
    if K_pad != K:
        x_p = jnp.pad(x_p, ((0, 0), (0, K_pad - K)))
        w_t = jnp.pad(w_t, ((0, K_pad - K), (0, 0)))

    # Pack bias / gamma / beta into a single (3, N) operand (one DMA).
    pgb = jnp.stack([bias, gamma, beta], axis=0)

    # ---- VMEM limit (includes epilogue temporaries, capped per generation) ---
    if vmem_limit_bytes is None:
        est = (2 * tm * tk * x_bpe
               + 2 * tk * N * w_bpe
               + 2 * tm * N * o_bpe
               + (tm * N * 4 if k_steps > 1 else 0)
               + 3 * tm * N * 4
               + 2 * 3 * N * 4)
        vmem_limit_bytes = int(min(max(32 * 1024 * 1024, int(1.25 * est)), usable))

    # ---- launch ---------------------------------------------------------------
    if k_steps == 1:
        out = pl.pallas_call(
            _fullk_kernel,
            out_shape=jax.ShapeDtypeStruct((B_pad, N), out_dtype),
            grid_spec=pltpu.PrefetchScalarGridSpec(
                num_scalar_prefetch=0,
                grid=(B_pad // tm,),
                in_specs=[
                    pl.BlockSpec((tm, K_pad), lambda i: (i, 0)),   # x tile
                    pl.BlockSpec((K_pad, N), lambda i: (0, 0)),    # resident weight
                    pl.BlockSpec((3, N), lambda i: (0, 0)),        # packed params
                ],
                out_specs=pl.BlockSpec((tm, N), lambda i: (i, 0)),
            ),
            compiler_params=pltpu.CompilerParams(
                dimension_semantics=("parallel",),
                vmem_limit_bytes=vmem_limit_bytes,
            ),
        )(x_p, w_t, pgb)
    else:
        out = pl.pallas_call(
            _ktiled_kernel,
            out_shape=jax.ShapeDtypeStruct((B_pad, N), out_dtype),
            grid_spec=pltpu.PrefetchScalarGridSpec(
                num_scalar_prefetch=0,
                grid=(B_pad // tm, k_steps),
                in_specs=[
                    pl.BlockSpec((tm, tk), lambda i, k: (i, k)),   # x tile
                    pl.BlockSpec((tk, N), lambda i, k: (k, 0)),    # weight K-slab
                    pl.BlockSpec((3, N), lambda i, k: (0, 0)),     # packed params
                ],
                out_specs=pl.BlockSpec((tm, N), lambda i, k: (i, 0)),
                scratch_shapes=[pltpu.VMEM((tm, N), jnp.float32)],
            ),
            compiler_params=pltpu.CompilerParams(
                dimension_semantics=("parallel", "arbitrary"),
                vmem_limit_bytes=vmem_limit_bytes,
            ),
        )(x_p, w_t, pgb)

    return out[:B] if B_pad != B else out


# ------------------------------ reference ------------------------------------

def reference(x, weight, bias, gamma, beta):
    h = x @ weight.T + bias
    h = jnp.maximum(h, 0.0)
    mean = jnp.mean(h, axis=-1, keepdims=True)
    var = jnp.mean((h - mean) ** 2, axis=-1, keepdims=True)
    return (h - mean) / jnp.sqrt(var + LN_EPS) * gamma + beta


if __name__ == "__main__":
    # Small shapes consistent with the module's forward: (batch, in_features).
    batch, in_features, out_features = 8, 32, 128

    key = jax.random.PRNGKey(0)
    kx, kw, kb = jax.random.split(key, 3)

    x = jax.random.normal(kx, (batch, in_features), dtype=jnp.float32)

    # Kaiming-uniform-like bound for the linear layer; LayerNorm defaults.
    bound = 1.0 / (in_features ** 0.5)
    weight = jax.random.uniform(
        kw, (out_features, in_features), minval=-bound, maxval=bound,
        dtype=jnp.float32)
    bias = jax.random.uniform(
        kb, (out_features,), minval=-bound, maxval=bound, dtype=jnp.float32)
    gamma = jnp.ones((out_features,), dtype=jnp.float32)
    beta = jnp.zeros((out_features,), dtype=jnp.float32)

    out = linear_layer_norm_relu(x, weight, bias, gamma, beta)
    out = jax.block_until_ready(out)

    ref = reference(x, weight, bias, gamma, beta)
    assert out.shape == (batch, out_features)
    assert jnp.allclose(out, ref, atol=1e-4, rtol=1e-4), "mismatch vs reference"

    print("KERNEL_OK")
</pallas_src>

<mosaic_0001>
module attributes {stable_mosaic.version = 11 : i64} {
  func.func @_fullk_kernel(%arg0: i32, %arg1: memref<8x32xf32, #tpu.memory_space<vmem>>, %arg2: memref<32x128xf32, #tpu.memory_space<vmem>>, %arg3: memref<3x128xf32, #tpu.memory_space<vmem>>, %arg4: memref<8x128xf32, #tpu.memory_space<vmem>>) attributes {dimension_semantics = [#tpu.dimension_semantics<parallel>], iteration_bounds = array<i64: 1>, scalar_prefetch = 0 : i64, scratch_operands = 0 : i64, tpu.core_type = #tpu.core_type<tc>, window_params = [{transform_indices = @transform_0, window_bounds = array<i64: 8, 32>}, {pipeline_mode = #tpu.pipeline_mode<synchronous>, transform_indices = @transform_1, window_bounds = array<i64: 32, 128>}, {pipeline_mode = #tpu.pipeline_mode<synchronous>, transform_indices = @transform_2, window_bounds = array<i64: 3, 128>}, {transform_indices = @transform_3, window_bounds = array<i64: 8, 128>}]} {
    %c0 = arith.constant 0 : index
    %c0_0 = arith.constant 0 : index
    %0 = vector.load %arg1[%c0, %c0_0] : memref<8x32xf32, #tpu.memory_space<vmem>>, vector<8x32xf32>
    %c0_1 = arith.constant 0 : index
    %c0_2 = arith.constant 0 : index
    %1 = vector.load %arg2[%c0_1, %c0_2] : memref<32x128xf32, #tpu.memory_space<vmem>>, vector<32x128xf32>
    %cst = arith.constant dense<0.000000e+00> : vector<8x128xf32>
    %2 = tpu.matmul %0, %1, %cst {dimension_numbers = #tpu.dot_dimension_numbers<[1], [0], [0], [1], [0, 0, 1, 1], [], []>} : vector<8x32xf32>, vector<32x128xf32>, vector<8x128xf32> -> vector<8x128xf32>
    %c0_3 = arith.constant 0 : index
    %c0_4 = arith.constant 0 : index
    %3 = vector.load %arg3[%c0_3, %c0_4] : memref<3x128xf32, #tpu.memory_space<vmem>>, vector<1x128xf32>
    %4 = vector.broadcast %3 : vector<1x128xf32> to vector<8x128xf32>
    %5 = arith.addf %2, %4 : vector<8x128xf32>
    %cst_5 = arith.constant 0.000000e+00 : f32
    %6 = vector.broadcast %cst_5 : f32 to vector<8x128xf32>
    %7 = arith.maximumf %5, %6 : vector<8x128xf32>
    %c1 = arith.constant 1 : index
    %c0_6 = arith.constant 0 : index
    %8 = vector.load %arg3[%c1, %c0_6] : memref<3x128xf32, #tpu.memory_space<vmem>>, vector<1x128xf32>
    %c2 = arith.constant 2 : index
    %c0_7 = arith.constant 0 : index
    %9 = vector.load %arg3[%c2, %c0_7] : memref<3x128xf32, #tpu.memory_space<vmem>>, vector<1x128xf32>
    %cst_8 = arith.constant dense<0.000000e+00> : vector<8xf32>
    %10 = vector.multi_reduction <add>, %7, %cst_8 [1] : vector<8x128xf32> to vector<8xf32>
    %11 = vector.shape_cast %10 : vector<8xf32> to vector<8x1xf32>
    %cst_9 = arith.constant 7.812500e-03 : f32
    %12 = vector.broadcast %cst_9 : f32 to vector<8x1xf32>
    %13 = arith.mulf %11, %12 : vector<8x1xf32>
    %14 = arith.mulf %7, %7 : vector<8x128xf32>
    %cst_10 = arith.constant dense<0.000000e+00> : vector<8xf32>
    %15 = vector.multi_reduction <add>, %14, %cst_10 [1] : vector<8x128xf32> to vector<8xf32>
    %16 = vector.shape_cast %15 : vector<8xf32> to vector<8x1xf32>
    %cst_11 = arith.constant 7.812500e-03 : f32
    %17 = vector.broadcast %cst_11 : f32 to vector<8x1xf32>
    %18 = arith.mulf %16, %17 : vector<8x1xf32>
    %19 = arith.mulf %13, %13 : vector<8x1xf32>
    %20 = arith.subf %18, %19 : vector<8x1xf32>
    %cst_12 = arith.constant 0.000000e+00 : f32
    %21 = vector.broadcast %cst_12 : f32 to vector<8x1xf32>
    %22 = arith.maximumf %20, %21 : vector<8x1xf32>
    %cst_13 = arith.constant 9.99999974E-6 : f32
    %23 = vector.broadcast %cst_13 : f32 to vector<8x1xf32>
    %24 = arith.addf %22, %23 : vector<8x1xf32>
    %25 = math.rsqrt %24 : vector<8x1xf32>
    %26 = vector.broadcast %13 : vector<8x1xf32> to vector<8x128xf32>
    %27 = arith.subf %7, %26 : vector<8x128xf32>
    %28 = vector.broadcast %25 : vector<8x1xf32> to vector<8x128xf32>
    %29 = vector.broadcast %8 : vector<1x128xf32> to vector<8x128xf32>
    %30 = arith.mulf %28, %29 : vector<8x128xf32>
    %31 = arith.mulf %27, %30 : vector<8x128xf32>
    %32 = vector.broadcast %9 : vector<1x128xf32> to vector<8x128xf32>
    %33 = arith.addf %31, %32 : vector<8x128xf32>
    %c0_14 = arith.constant 0 : index
    %c0_15 = arith.constant 0 : index
    %34 = vector.load %arg4[%c0_14, %c0_15] : memref<8x128xf32, #tpu.memory_space<vmem>>, vector<8x128xf32>
    tpu.vector_store %arg4[%c0_14, %c0_15], %33 {strides = array<i32>} : memref<8x128xf32, #tpu.memory_space<vmem>>, vector<8x128xf32>,
    return
  }
  func.func @transform_0(%arg0: i32) -> (i32, i32) {
    %c0_i32 = arith.constant 0 : i32
    %c0_i32_0 = arith.constant 0 : i32
    return %arg0, %c0_i32 : i32, i32
  }
  func.func @transform_1(%arg0: i32) -> (i32, i32) {
    %c0_i32 = arith.constant 0 : i32
    %c0_i32_0 = arith.constant 0 : i32
    %c0_i32_1 = arith.constant 0 : i32
    return %c0_i32, %c0_i32_0 : i32, i32
  }
  func.func @transform_2(%arg0: i32) -> (i32, i32) {
    %c0_i32 = arith.constant 0 : i32
    %c0_i32_0 = arith.constant 0 : i32
    %c0_i32_1 = arith.constant 0 : i32
    return %c0_i32, %c0_i32_0 : i32, i32
  }
  func.func @transform_3(%arg0: i32) -> (i32, i32) {
    %c0_i32 = arith.constant 0 : i32
    %c0_i32_0 = arith.constant 0 : i32
    return %arg0, %c0_i32 : i32, i32
  }
}

</mosaic_0001>

<llo_original>
// kernel: tpu_custom_call.1
$region0: #{tpu_custom_call.1}
  #allocation0 [shape = 'u32[]', space=smem, size = 0x4, offset = 0x4, fixed_abs, tag = 'smem constant byte address 0x4 - core index']
  #allocation1 [shape = 'u32[144,128]{1,0:T(1,128)}', space=vmem, size = 0x12000, scoped, tag = 'internal scratch']
  %s0 = inlined_call_operand.hbm [shape: f32[8,32], index: 0, kind: input, shape index: {}]
  %s1 = inlined_call_operand.hbm [shape: f32[32,128], index: 1, kind: input, shape index: {}]
  %s2 = inlined_call_operand.vmem [shape: f32[3,128], index: 2, kind: input, shape index: {}]
  %s3 = inlined_call_operand.hbm [shape: f32[8,128], index: 3, kind: output, shape index: {}]
  %s4 = sld [smem:[#allocation0]]
  $region30: #{tpu_custom_call.1} parent=0
    _
  %s6 = ssub.s32 1, %s4
  %s7 = scalar_select 0, %s6, %s4
  $region1: #{tpu_custom_call.1} parent=0
    #allocation2 [shape = 'u8[4096]{0}', space=vmem, size = 0x1000, scoped, tag = 'input window, operand 0, single buffered']
    #allocation3 [shape = 's32[1]{0}', space=sflag, size = 0x4, scoped, tag = 'scoped memory for tpu_custom_call.1']
    #allocation4 [shape = 's32[1]{0}', space=sflag, size = 0x4, scoped, tag = 'scoped memory for tpu_custom_call.1']
    #allocation5 [shape = 'u8[16384]{0}', space=vmem, size = 0x4000, scoped, tag = 'input window, operand 1, single buffered']
    #allocation6 [shape = 's32[1]{0}', space=sflag, size = 0x4, scoped, tag = 'scoped memory for tpu_custom_call.1']
    #allocation7 [shape = 'u8[4096]{0}', space=vmem, size = 0x1000, scoped, tag = 'output window, operand 0, single buffered']
    %8 = vsyncpa [#allocation3], 0
    %9 = vsyncpa [#allocation6], 0
    %10 = vsyncpa [#allocation4], 0
    // Predicated region
    $region2: #{tpu_custom_call.1} parent=1 // pred_check
      _
    $region3: #{tpu_custom_call.1} parent=1 // pred_check_branch
      %12 = sbr.rel (0) target = $region5
    $region4: #{tpu_custom_call.1} parent=1 // pred_region
      %s14 = ssub.s32 128, 128
      %15 = vsyncadd [#allocation3], %s14
      %s17 = sshll.u32 [#allocation2], 4
      %s18 = int_to_ptr.vmem [resolvable:$true] %s17
      %20 = dma.hbm_to_vmem [thread:$0]  %s0, 128, %s18, [#allocation3]
    $region5: #{tpu_custom_call.1} parent=1 // pred_fallthru
      _
    // Predicated region
    $region6: #{tpu_custom_call.1} parent=1 // pred_check
      _
    $region7: #{tpu_custom_call.1} parent=1 // pred_check_branch
      %22 = sbr.rel (0) target = $region9
    $region8: #{tpu_custom_call.1} parent=1 // pred_region
      %s24 = ssub.s32 512, 512
      %25 = vsyncadd [#allocation6], %s24
      %s26 = sshll.u32 [#allocation5], 4
      %s27 = int_to_ptr.vmem [resolvable:$true] %s26
      %32 = dma.hbm_to_vmem [thread:$0]  %s1, 512, %s27, [#allocation6], 128, 128, 8
    $region9: #{tpu_custom_call.1} parent=1 // pred_fallthru
      _
    // Predicated region
    $region10: #{tpu_custom_call.1} parent=1 // pred_check
      _
    $region11: #{tpu_custom_call.1} parent=1 // pred_check_branch
      %34 = sbr.rel (0) target = $region13
    $region12: #{tpu_custom_call.1} parent=1 // pred_region
      _
    $region13: #{tpu_custom_call.1} parent=1 // pred_fallthru
      _
    // Predicated region
    $region14: #{tpu_custom_call.1} parent=1 // pred_check
      _
    $region15: #{tpu_custom_call.1} parent=1 // pred_check_branch
      %36 = sbr.rel (0) target = $region17
    $region16: #{tpu_custom_call.1} parent=1 // pred_region
      %37 = dma.done [#allocation3], 128
    $region17: #{tpu_custom_call.1} parent=1 // pred_fallthru
      _
    // Predicated region
    $region18: #{tpu_custom_call.1} parent=1 // pred_check
      _
    $region19: #{tpu_custom_call.1} parent=1 // pred_check_branch
      %39 = sbr.rel (0) target = $region21
    $region20: #{tpu_custom_call.1} parent=1 // pred_region
      %40 = dma.done [#allocation6], 512
    $region21: #{tpu_custom_call.1} parent=1 // pred_fallthru
      _
    %v41 = vld [vmem:[#allocation2] sm:$0xff]
    %v42 = vld [vmem:[#allocation5] sm:$0xff]
    %v43 = vld [vmem:[#allocation5 + $0x8] sm:$0xff]
    %v44 = vld [vmem:[#allocation5 + $0x10] sm:$0xff]
    %v45 = vld [vmem:[#allocation5 + $0x18] sm:$0xff]
    %v46 = vld [vmem:[%s2] sm:$0x1]
    %v47 = vlaneseq
    %v48 = vshrl.u32 %v47, 7
    %v49 = vsub.s32 0, %v48
    %v50 = vrot.slane %v46, %v49
    %vm51 = vcmask 261120
    %v53 = vsel %vm51, %v41, 0
    %55 = vmatprep.subr.mxu0 0.0
    %56 = vmatpush1.msra.mxu0 %v42
    %57 = vmatprep.subr.mxu0 0.0
    %58 = vmatpush1.msra.mxu0 %v43
    %59 = vmatprep.subr.mxu0 0.0
    %60 = vmatpush1.msra.mxu0 %v44
    %61 = vmatprep.subr.mxu0 0.0
    %62 = vmatpush1.msra.mxu0 %v45
    %63 = vmatprep.subr.mxu0 0.0
    %64 = vmatpush1.msra.mxu0 0.0
    %65 = vmatprep.subr.mxu0 0.0
    %66 = vmatpush1.msra.mxu0 0.0
    %67 = vmatprep.subr.mxu0 0.0
    %68 = vmatpush1.msra.mxu0 0.0
    %69 = vmatprep.subr.mxu0 0.0
    %70 = vmatpush1.msra.mxu0 0.0
    %71 = vmatprep.subr.mxu0 0.0
    %72 = vmatpush1.msra.mxu0 0.0
    %73 = vmatprep.subr.mxu0 0.0
    %74 = vmatpush1.msra.mxu0 0.0
    %75 = vmatprep.subr.mxu0 0.0
    %76 = vmatpush1.msra.mxu0 0.0
    %77 = vmatprep.subr.mxu0 0.0
    %78 = vmatpush1.msra.mxu0 0.0
    %79 = vmatprep.subr.mxu0 0.0
    %80 = vmatpush1.msra.mxu0 0.0
    %81 = vmatprep.subr.mxu0 0.0
    %82 = vmatpush1.msra.mxu0 0.0
    %83 = vmatprep.subr.mxu0 0.0
    %84 = vmatpush1.msra.mxu0 0.0
    %85 = vmatprep.subr.mxu0 0.0
    %86 = vmatpush1.msra.mxu0 0.0
    %87 = vmatprep.subr.mxu0 0.0
    %88 = vmatpush1.msra.mxu0 0.0
    %89 = vmatprep.subr.mxu0 0.0
    %90 = vmatpush1.msra.mxu0 0.0
    %91 = vmatprep.subr.mxu0 0.0
    %92 = vmatpush1.msra.mxu0 0.0
    %93 = vmatprep.subr.mxu0 0.0
    %94 = vmatpush1.msra.mxu0 0.0
    %95 = vmatprep.subr.mxu0 0.0
    %96 = vmatpush1.msra.mxu0 0.0
    %97 = vmatprep.subr.mxu0 0.0
    %98 = vmatpush1.msra.mxu0 0.0
    %99 = vmatprep.subr.mxu0 0.0
    %100 = vmatpush1.msra.mxu0 0.0
    %101 = vmatprep.subr.mxu0 0.0
    %102 = vmatpush1.msra.mxu0 0.0
    %103 = vmatprep.subr.mxu0 0.0
    %104 = vmatpush1.msra.mxu0 0.0
    %105 = vmatprep.subr.mxu0 0.0
    %106 = vmatpush1.msra.mxu0 0.0
    %107 = vmatprep.subr.mxu0 0.0
    %108 = vmatpush1.msra.mxu0 0.0
    %109 = vmatprep.subr.mxu0 0.0
    %110 = vmatpush1.msra.mxu0 0.0
    %111 = vmatprep.subr.mxu0 0.0
    %112 = vmatpush1.msra.mxu0 0.0
    %113 = vmatprep.subr.mxu0 0.0
    %114 = vmatpush1.msra.mxu0 0.0
    %115 = vmatprep.subr.mxu0 0.0
    %116 = vmatpush1.msra.mxu0 0.0
    %117 = vmatprep.subr.mxu0 0.0
    %118 = vmatpush1.msra.mxu0 0.0
    %119 = vmatprep.mubr.f32.mxu0 0.0
    %120 = vmatmul.mubr.f32.gmra.mrb[0].mxu0 %v53
    %v121 = vpop.f32.mrb[0].mxu0
    %v122 = vadd.f32 %v50, %v121
    %v123 = vpop.f32.mrb[0].mxu0
    %124 = vdwg.mxu0
    %v125 = vmax.f32 %v122, 0.0
    %v126 = vld [vmem:[%s2 + $0x1] sm:$0x1]
    %v127 = vld [vmem:[%s2 + $0x2] sm:$0x1]
    %128 = vadd.xlane.f32.xlu0 %v125
    %v129 = vpop.xlane.xlu0 %128
    %v130 = vmul.f32 %v129, 0.0078125
    %v131 = vmul.f32 %v125, %v125
    %132 = vadd.xlane.f32.xlu0 %v131
    %v133 = vpop.xlane.xlu0 %132
    %v134 = vmul.f32 %v133, 0.0078125
    %v135 = vmul.f32 %v130, %v130
    %v136 = vsub.f32 %v134, %v135
    %v137 = vmax.f32 %v136, 0.0
    %v138 = vadd.f32 %v137, 1e-05
    %v139 = vrsqrt.pop %v138
    %v140 = vsub.f32 %v125, %v130
    %v141 = vlaneseq
    %v142 = vshrl.u32 %v141, 7
    %v143 = vsub.s32 0, %v142
    %v144 = vrot.slane %v126, %v143
    %v145 = vmul.f32 %v139, %v144
    %v146 = vmul.f32 %v140, %v145
    %v147 = vlaneseq
    %v148 = vshrl.u32 %v147, 7
    %v149 = vsub.s32 0, %v148
    %v150 = vrot.slane %v127, %v149
    %v151 = vadd.f32 %v146, %v150
    %152 = vst [vmem:[#allocation7] sm:$0xff] %v151
    // Predicated region
    $region22: #{tpu_custom_call.1} parent=1 // pred_check
      _
    $region23: #{tpu_custom_call.1} parent=1 // pred_check_branch
      %154 = sbr.rel (0) target = $region25
    $region24: #{tpu_custom_call.1} parent=1 // pred_region
      %s156 = ssub.s32 128, 128
      %157 = vsyncadd [#allocation4], %s156
      %s159 = sshll.u32 [#allocation7], 4
      %s160 = int_to_ptr.vmem [resolvable:$true] %s159
      %162 = dma.vmem_to_hbm [thread:$0]  %s160, 128, %s3, [#allocation4]
    $region25: #{tpu_custom_call.1} parent=1 // pred_fallthru
      _
    // Predicated region
    $region26: #{tpu_custom_call.1} parent=1 // pred_check
      _
    $region27: #{tpu_custom_call.1} parent=1 // pred_check_branch
      %164 = sbr.rel (0) target = $region29
    $region28: #{tpu_custom_call.1} parent=1 // pred_region
      %165 = dma.done [#allocation4], 128
    $region29: #{tpu_custom_call.1} parent=1 // pred_fallthru
      _
    %166 = vsyncpa [#allocation3], 1
    %167 = vsyncpa [#allocation6], 1
    %168 = vsyncpa [#allocation4], 1

</llo_original>
